<compile_context>
chip_gen: v5e
topology: v5e:2x2
jax: 0.10.0
libtpu: 0.0.40
codegen_flags: <defaults>
</compile_context>

<pallas_src>
import functools
import math

import jax
import jax.numpy as jnp
from jax.experimental import pallas as pl
from jax.experimental.pallas import tpu as pltpu


# ---------------------------------------------------------------------------
# Pallas kernels
#   x_ref:   (P, R_TILE, T_OUT_TILE)   window element on the major axis
#   out_ref: (R_TILE, T_OUT_TILE)      lane-dense output tile
# ---------------------------------------------------------------------------
def _max_pool_kernel(x_ref, out_ref, idx_ref, *, pool_size):
    best = x_ref[0]                                   # (R_TILE, T_OUT_TILE)
    best_k = jnp.zeros(best.shape, jnp.int32)
    # pool_size is small in practice -> static unroll keeps a short compare
    # chain.  TODO(synk): switch to lax.fori_loop(..., unroll=True) for P >> 8.
    for k in range(1, pool_size):
        v = x_ref[k]                                  # lane-dense slice
        upd = v > best                                # first occurrence wins ties
        best = jnp.where(upd, v, best)
        best_k = jnp.where(upd, jnp.int32(k), best_k)
    out_ref[...] = best.astype(out_ref.dtype)
    # MaxPool1d(return_indices=True): index into the padded/cut time axis,
    # i.e. window_start_position + argmax_within_window.
    t_tile = out_ref.shape[1]
    col = jax.lax.broadcasted_iota(jnp.int32, best.shape, 1)
    col = col + pl.program_id(1) * t_tile             # global output column
    idx_ref[...] = col * pool_size + best_k


def _max_pool_values_kernel(x_ref, out_ref, *, pool_size):
    best = x_ref[0]
    for k in range(1, pool_size):
        best = jnp.maximum(best, x_ref[k])
    out_ref[...] = best.astype(out_ref.dtype)


def _avg_pool_kernel(x_ref, out_ref, *, pool_size):
    # Explicit sum of lane-dense slices * compile-time 1/P (no XLU reduce).
    acc = x_ref[0].astype(jnp.float32)
    for k in range(1, pool_size):
        acc = acc + x_ref[k].astype(jnp.float32)
    out_ref[...] = (acc * (1.0 / pool_size)).astype(out_ref.dtype)


# ---------------------------------------------------------------------------
# Pad / Cut semantics from the PyTorch module (plain JAX glue)
# ---------------------------------------------------------------------------
def _pad_1d(x, size, side):
    if side is None or size < 1:
        return x
    if side == 'front':
        front, end = size, 0
    elif side == 'both':
        front, end = size // 2, math.ceil(size / 2)
    elif side == 'end':
        front, end = 0, size
    else:
        raise ValueError(f'pad side {side} unknown')
    return jnp.pad(x, ((0, 0), (0, 0), (front, end)), mode='constant')


def _cut_1d_both(x, size):
    if size < 1:
        return x
    return x[:, :, size // 2: x.shape[-1] - math.ceil(size / 2)]


# ---------------------------------------------------------------------------
# Tile selection (lane-dense, VMEM-aware; falls back to full dims)
# ---------------------------------------------------------------------------
_R_TILE_CANDIDATES = (256, 128, 64, 32, 16, 8)
_T_TILE_CANDIDATES = (512, 256, 128)


def _pick_tile(dim, candidates):
    for t in candidates:
        if dim >= t and dim % t == 0:
            return t
    return dim  # full-dim block (always legal for BlockSpec)


# ---------------------------------------------------------------------------
# Pool1d forward
# ---------------------------------------------------------------------------
def pool1d(x, pooling, pool_size, padding='both', return_indices=True):
    """Replicates Pool1d.forward for x of shape (B, C, T)."""
    if pool_size < 2:
        return x, None

    if padding is not None:
        pad_size = pool_size - 1 - (x.shape[-1] - 1) % pool_size
        x = _pad_1d(x, pad_size, padding)
    x = _cut_1d_both(x, x.shape[-1] % pool_size)

    B, C, T = x.shape
    P = pool_size
    T_out = T // P
    R = B * C

    # (B, C, T) -> (P, R, T_out): pooled time on the lane axis, window element
    # on the cheap major axis (no sublane/lane padding of the P axis).
    xt = jnp.transpose(x.reshape(R, T_out, P), (2, 0, 1))

    # Lane tile: multiple of 128 when possible (unmasked vst writeback).
    t_tile = _pick_tile(T_out, _T_TILE_CANDIDATES)
    # Keep the input block to a few MiB so double-buffered in/out blocks stay
    # well under the 32 MiB scoped-VMEM default (and v7x's 64 MiB physical).
    bytes_per_row = P * t_tile * x.dtype.itemsize
    max_r = max(8, (4 * 1024 * 1024) // max(bytes_per_row, 1))
    r_candidates = tuple(c for c in _R_TILE_CANDIDATES if c <= max_r) or (8,)
    r_tile = _pick_tile(R, r_candidates)

    grid = (R // r_tile, T_out // t_tile)
    in_spec = pl.BlockSpec((P, r_tile, t_tile), lambda i, j: (0, i, j))
    out_spec = pl.BlockSpec((r_tile, t_tile), lambda i, j: (i, j))
    cparams = pltpu.CompilerParams(
        dimension_semantics=("parallel", "parallel"))

    if pooling == 'max':
        if return_indices:
            pooled, idx = pl.pallas_call(
                functools.partial(_max_pool_kernel, pool_size=P),
                out_shape=(
                    jax.ShapeDtypeStruct((R, T_out), x.dtype),
                    jax.ShapeDtypeStruct((R, T_out), jnp.int32),
                ),
                grid=grid,
                in_specs=[in_spec],
                out_specs=(out_spec, out_spec),
                compiler_params=cparams,
            )(xt)
            return pooled.reshape(B, C, T_out), idx.reshape(B, C, T_out)
        pooled = pl.pallas_call(
            functools.partial(_max_pool_values_kernel, pool_size=P),
            out_shape=jax.ShapeDtypeStruct((R, T_out), x.dtype),
            grid=grid,
            in_specs=[in_spec],
            out_specs=out_spec,
            compiler_params=cparams,
        )(xt)
        return pooled.reshape(B, C, T_out), None
    elif pooling == 'avg':
        pooled = pl.pallas_call(
            functools.partial(_avg_pool_kernel, pool_size=P),
            out_shape=jax.ShapeDtypeStruct((R, T_out), x.dtype),
            grid=grid,
            in_specs=[in_spec],
            out_specs=out_spec,
            compiler_params=cparams,
        )(xt)
        return pooled.reshape(B, C, T_out), None
    else:
        raise ValueError(f'{pooling} pooling unknown.')


# ---------------------------------------------------------------------------
if __name__ == "__main__":
    def ref_pool(x, pooling, pool_size, padding='both'):
        # pure-JAX reference replicating the module (zero pad, then pool)
        if padding is not None:
            pad_size = pool_size - 1 - (x.shape[-1] - 1) % pool_size
            xp = _pad_1d(x, pad_size, padding)
        else:
            xp = x
        xp = _cut_1d_both(xp, xp.shape[-1] % pool_size)
        B, C, T = xp.shape
        xw = xp.reshape(B, C, T // pool_size, pool_size)
        if pooling == 'max':
            return xw.max(axis=-1), xp
        return xw.mean(axis=-1), xp

    key = jax.random.PRNGKey(0)

    # Small shape consistent with the module (grid collapses to (1,1)).
    B, C, T, P = 2, 4, 16, 3
    x = jax.random.normal(key, (B, C, T), dtype=jnp.float32)

    y_max, idx = pool1d(x, 'max', P, 'both')
    jax.block_until_ready((y_max, idx))
    ref_max, xp = ref_pool(x, 'max', P, 'both')
    assert jnp.allclose(y_max, ref_max)
    assert jnp.allclose(jnp.take_along_axis(xp, idx, axis=-1), ref_max)

    y_avg, idx_avg = pool1d(x, 'avg', P, 'both')
    jax.block_until_ready(y_avg)
    ref_avg, _ = ref_pool(x, 'avg', P, 'both')
    assert idx_avg is None
    assert jnp.allclose(y_avg, ref_avg, atol=1e-6)

    # Slightly larger shape exercising the tiled grid (grid = (1, 3)).
    B2, C2, T2, P2 = 2, 8, 1152, 3      # R=16, T_out=384 -> t_tile=128
    x2 = jax.random.normal(jax.random.PRNGKey(1), (B2, C2, T2),
                           dtype=jnp.float32)
    y2, idx2 = pool1d(x2, 'max', P2, 'both')
    jax.block_until_ready((y2, idx2))
    ref2, xp2 = ref_pool(x2, 'max', P2, 'both')
    assert jnp.allclose(y2, ref2)
    assert jnp.allclose(jnp.take_along_axis(xp2, idx2, axis=-1), ref2)

    y2a, _ = pool1d(x2, 'avg', P2, 'both')
    jax.block_until_ready(y2a)
    ref2a, _ = ref_pool(x2, 'avg', P2, 'both')
    assert jnp.allclose(y2a, ref2a, atol=1e-6)

    print("KERNEL_OK")
</pallas_src>

<mosaic_0001>
module attributes {stable_mosaic.version = 11 : i64} {
  func.func @_max_pool_kernel(%arg0: i32, %arg1: i32, %arg2: memref<3x8x6xf32, #tpu.memory_space<vmem>>, %arg3: memref<8x6xf32, #tpu.memory_space<vmem>>, %arg4: memref<8x6xi32, #tpu.memory_space<vmem>>) attributes {dimension_semantics = [#tpu.dimension_semantics<parallel>, #tpu.dimension_semantics<parallel>], iteration_bounds = array<i64: 1, 1>, scalar_prefetch = 0 : i64, scratch_operands = 0 : i64, tpu.core_type = #tpu.core_type<tc>, window_params = [{transform_indices = @transform_0, window_bounds = array<i64: 3, 8, 6>}, {transform_indices = @transform_1, window_bounds = array<i64: 8, 6>}, {transform_indices = @transform_2, window_bounds = array<i64: 8, 6>}]} {
    %c0 = arith.constant 0 : index
    %c0_0 = arith.constant 0 : index
    %c0_1 = arith.constant 0 : index
    %0 = vector.load %arg2[%c0, %c0_0, %c0_1] : memref<3x8x6xf32, #tpu.memory_space<vmem>>, vector<1x8x6xf32>
    %1 = vector.shape_cast %0 : vector<1x8x6xf32> to vector<8x6xf32>
    %c0_i32 = arith.constant 0 : i32
    %2 = vector.broadcast %c0_i32 : i32 to vector<8x6xi32>
    %c1 = arith.constant 1 : index
    %c0_2 = arith.constant 0 : index
    %c0_3 = arith.constant 0 : index
    %3 = vector.load %arg2[%c1, %c0_2, %c0_3] : memref<3x8x6xf32, #tpu.memory_space<vmem>>, vector<1x8x6xf32>
    %4 = vector.shape_cast %3 : vector<1x8x6xf32> to vector<8x6xf32>
    %5 = arith.cmpf ogt, %4, %1 : vector<8x6xf32>
    %6 = arith.select %5, %4, %1 : vector<8x6xi1>, vector<8x6xf32>
    %c1_i32 = arith.constant 1 : i32
    %7 = vector.broadcast %c1_i32 : i32 to vector<8x6xi32>
    %8 = arith.select %5, %7, %2 : vector<8x6xi1>, vector<8x6xi32>
    %c2 = arith.constant 2 : index
    %c0_4 = arith.constant 0 : index
    %c0_5 = arith.constant 0 : index
    %9 = vector.load %arg2[%c2, %c0_4, %c0_5] : memref<3x8x6xf32, #tpu.memory_space<vmem>>, vector<1x8x6xf32>
    %10 = vector.shape_cast %9 : vector<1x8x6xf32> to vector<8x6xf32>
    %11 = arith.cmpf ogt, %10, %6 : vector<8x6xf32>
    %12 = arith.select %11, %10, %6 : vector<8x6xi1>, vector<8x6xf32>
    %c2_i32 = arith.constant 2 : i32
    %13 = vector.broadcast %c2_i32 : i32 to vector<8x6xi32>
    %14 = arith.select %11, %13, %8 : vector<8x6xi1>, vector<8x6xi32>
    %c0_6 = arith.constant 0 : index
    %c0_7 = arith.constant 0 : index
    %15 = vector.load %arg3[%c0_6, %c0_7] : memref<8x6xf32, #tpu.memory_space<vmem>>, vector<8x6xf32>
    tpu.vector_store %arg3[%c0_6, %c0_7], %12 {strides = array<i32>} : memref<8x6xf32, #tpu.memory_space<vmem>>, vector<8x6xf32>,
    %16 = tpu.iota {dimensions = array<i32: 1>} : vector<8x6xi32>
    %c6_i32 = arith.constant 6 : i32
    %17 = arith.muli %arg1, %c6_i32 : i32
    %18 = vector.broadcast %17 : i32 to vector<8x6xi32>
    %19 = arith.addi %16, %18 : vector<8x6xi32>
    %c3_i32 = arith.constant 3 : i32
    %20 = vector.broadcast %c3_i32 : i32 to vector<8x6xi32>
    %21 = arith.muli %19, %20 : vector<8x6xi32>
    %22 = arith.addi %21, %14 : vector<8x6xi32>
    %c0_8 = arith.constant 0 : index
    %c0_9 = arith.constant 0 : index
    %23 = vector.load %arg4[%c0_8, %c0_9] : memref<8x6xi32, #tpu.memory_space<vmem>>, vector<8x6xi32>
    tpu.vector_store %arg4[%c0_8, %c0_9], %22 {strides = array<i32>} : memref<8x6xi32, #tpu.memory_space<vmem>>, vector<8x6xi32>,
    return
  }
  func.func @transform_0(%arg0: i32, %arg1: i32) -> (i32, i32, i32) {
    %c0_i32 = arith.constant 0 : i32
    %c0_i32_0 = arith.constant 0 : i32
    return %c0_i32, %arg0, %arg1 : i32, i32, i32
  }
  func.func @transform_1(%arg0: i32, %arg1: i32) -> (i32, i32) {
    %c0_i32 = arith.constant 0 : i32
    return %arg0, %arg1 : i32, i32
  }
  func.func @transform_2(%arg0: i32, %arg1: i32) -> (i32, i32) {
    %c0_i32 = arith.constant 0 : i32
    return %arg0, %arg1 : i32, i32
  }
}

</mosaic_0001>

<llo_original>
// kernel: tpu_custom_call.1
$region0: #{tpu_custom_call.1}
  #allocation0 [shape = 'u32[]', space=smem, size = 0x4, offset = 0x4, fixed_abs, tag = 'smem constant byte address 0x4 - core index']
  #allocation1 [shape = 'u32[72,128]{1,0:T(1,128)}', space=vmem, size = 0x9000, scoped, tag = 'internal scratch']
  %s0 = inlined_call_operand.hbm [shape: f32[3,8,6], index: 0, kind: input, shape index: {}]
  %s1 = inlined_call_operand.hbm [shape: f32[8,6], index: 1, kind: output, shape index: {0}]
  %s2 = inlined_call_operand.hbm [shape: s32[8,6], index: 2, kind: output, shape index: {1}]
  %3 = xla_tuple %s1, %s2
  %s4 = sld [smem:[#allocation0]]
  $region26: #{tpu_custom_call.1} parent=0
    _
  %s6 = ssub.s32 1, %s4
  %s7 = scalar_select 0, %s6, %s4
  $region1: #{tpu_custom_call.1} parent=0
    #allocation2 [shape = 'u8[12288]{0}', space=vmem, size = 0x3000, scoped, tag = 'input window, operand 0, single buffered']
    #allocation3 [shape = 's32[1]{0}', space=sflag, size = 0x4, scoped, tag = 'scoped memory for tpu_custom_call.1']
    #allocation4 [shape = 's32[1]{0}', space=sflag, size = 0x4, scoped, tag = 'scoped memory for tpu_custom_call.1']
    #allocation5 [shape = 'u8[4096]{0}', space=vmem, size = 0x1000, scoped, tag = 'output window, operand 0, single buffered']
    #allocation6 [shape = 'u8[4096]{0}', space=vmem, size = 0x1000, scoped, tag = 'output window, operand 1, single buffered']
    #allocation7 [shape = 's32[1]{0}', space=sflag, size = 0x4, scoped, tag = 'scoped memory for tpu_custom_call.1']
    %8 = vsyncpa [#allocation3], 0
    %9 = vsyncpa [#allocation4], 0
    %10 = vsyncpa [#allocation7], 0
    // Predicated region
    $region2: #{tpu_custom_call.1} parent=1 // pred_check
      _
    $region3: #{tpu_custom_call.1} parent=1 // pred_check_branch
      %12 = sbr.rel (0) target = $region5
    $region4: #{tpu_custom_call.1} parent=1 // pred_region
      %14 = vsyncadd [#allocation3], 0
      %s15 = sshll.u32 %s0, 4
      %s16 = int_to_ptr.hbm [resolvable:$true] %s15
      %s17 = sshll.u32 [#allocation2], 4
      %s18 = int_to_ptr.vmem [resolvable:$true] %s17
      %23 = dma.hbm_to_vmem [thread:$0]  %s16, 384, %s18, [#allocation3], 128, 128, 8
    $region5: #{tpu_custom_call.1} parent=1 // pred_fallthru
      _
    // Predicated region
    $region6: #{tpu_custom_call.1} parent=1 // pred_check
      _
    $region7: #{tpu_custom_call.1} parent=1 // pred_check_branch
      %25 = sbr.rel (0) target = $region9
    $region8: #{tpu_custom_call.1} parent=1 // pred_region
      %27 = dma.done [#allocation3], 384
    $region9: #{tpu_custom_call.1} parent=1 // pred_fallthru
      _
    %v28 = vld [vmem:[#allocation2] sm:$0xff]
    %s29 = scalar_lea.vmem [#allocation2], 8
    %v30 = vld [vmem:[%s29] sm:$0xff]
    %vm31 = vcmp.gt.f32.partialorder %v30, %v28
    %v32 = vsel %vm31, %v30, %v28
    %v33 = vsel %vm31, 1, 0
    %s34 = scalar_lea.vmem [#allocation2], 16
    %v35 = vld [vmem:[%s34] sm:$0xff]
    %vm36 = vcmp.gt.f32.partialorder %v35, %v32
    %v37 = vsel %vm36, %v35, %v32
    %v38 = vsel %vm36, 2, %v33
    %vm39 = vcmask 48128
    %40 = vst.msk [vmem:[#allocation5] sm:$0xff] %vm39, %v37
    %v41 = vlaneseq
    %v42 = vand.u32 %v41, 127
    %s43 = smul.u32 0, 6
    %v44 = vstv %s43
    %v45 = vadd.s32 %v42, %v44
    %v46 = vmul.u32 %v45, 3
    %v47 = vadd.s32 %v46, %v38
    %48 = vst.msk [vmem:[#allocation6] sm:$0xff] %vm39, %v47
    // Predicated region
    $region10: #{tpu_custom_call.1} parent=1 // pred_check
      _
    $region11: #{tpu_custom_call.1} parent=1 // pred_check_branch
      %50 = sbr.rel (0) target = $region13
    $region12: #{tpu_custom_call.1} parent=1 // pred_region
      %52 = vsyncadd [#allocation4], 0
      %s54 = sshll.u32 [#allocation5], 4
      %s55 = int_to_ptr.vmem [resolvable:$true] %s54
      %s56 = sshll.u32 %s1, 4
      %s57 = int_to_ptr.hbm [resolvable:$true] %s56
      %59 = dma.vmem_to_hbm [thread:$0]  %s55, 128, %s57, [#allocation4]
    $region13: #{tpu_custom_call.1} parent=1 // pred_fallthru
      _
    // Predicated region
    $region14: #{tpu_custom_call.1} parent=1 // pred_check
      _
    $region15: #{tpu_custom_call.1} parent=1 // pred_check_branch
      %61 = sbr.rel (0) target = $region17
    $region16: #{tpu_custom_call.1} parent=1 // pred_region
      %63 = vsyncadd [#allocation7], 0
      %s65 = sshll.u32 [#allocation6], 4
      %s66 = int_to_ptr.vmem [resolvable:$true] %s65
      %s67 = sshll.u32 %s2, 4
      %s68 = int_to_ptr.hbm [resolvable:$true] %s67
      %70 = dma.vmem_to_hbm [thread:$0]  %s66, 128, %s68, [#allocation7]
    $region17: #{tpu_custom_call.1} parent=1 // pred_fallthru
      _
    // Predicated region
    $region18: #{tpu_custom_call.1} parent=1 // pred_check
      _
    $region19: #{tpu_custom_call.1} parent=1 // pred_check_branch
      %72 = sbr.rel (0) target = $region21
    $region20: #{tpu_custom_call.1} parent=1 // pred_region
      %74 = dma.done [#allocation4], 128
    $region21: #{tpu_custom_call.1} parent=1 // pred_fallthru
      _
    // Predicated region
    $region22: #{tpu_custom_call.1} parent=1 // pred_check
      _
    $region23: #{tpu_custom_call.1} parent=1 // pred_check_branch
      %76 = sbr.rel (0) target = $region25
    $region24: #{tpu_custom_call.1} parent=1 // pred_region
      %78 = dma.done [#allocation7], 128
    $region25: #{tpu_custom_call.1} parent=1 // pred_fallthru
      _
    %79 = vsyncpa [#allocation3], 1
    %80 = vsyncpa [#allocation4], 1
    %81 = vsyncpa [#allocation7], 1

</llo_original>
